<compile_context>
chip_gen: v7x
topology: tpu7x:2x2x1
jax: 0.10.0
libtpu: 0.0.40
codegen_flags: <defaults>
</compile_context>

<pallas_src>
import math

import jax
import jax.numpy as jnp
from jax.experimental import pallas as pl
from jax.experimental.pallas import tpu as pltpu

LANE = 128     # lane width: pad all feature dims to this
SUBLANE = 8    # sublane width: batch tile must be a multiple of this


def _round_up(x, m):
    return ((x + m - 1) // m) * m


def _critic_kernel(x_ref,
                   w1_ref, b1_ref,
                   w2_ref, b2_ref,
                   w3_ref, b3_ref,
                   w4_ref, b4_ref,
                   out_ref):
    # Layer 1: Linear + ReLU   (bf16 inputs -> f32 accumulate on MXU)
    h = jnp.dot(x_ref[...], w1_ref[...], preferred_element_type=jnp.float32) + b1_ref[...]
    h = jnp.maximum(h, 0.0).astype(jnp.bfloat16)
    # Layer 2: Linear + ReLU
    h = jnp.dot(h, w2_ref[...], preferred_element_type=jnp.float32) + b2_ref[...]
    h = jnp.maximum(h, 0.0).astype(jnp.bfloat16)
    # Layer 3: Linear + ReLU
    h = jnp.dot(h, w3_ref[...], preferred_element_type=jnp.float32) + b3_ref[...]
    h = jnp.maximum(h, 0.0).astype(jnp.bfloat16)
    # Layer 4: Linear (no activation).  Output tile is lane-dense (TM, 128); the real
    # value lives in column 0 (padded weight columns / bias entries are exact zeros).
    v = jnp.dot(h, w4_ref[...], preferred_element_type=jnp.float32) + b4_ref[...]
    out_ref[...] = v


def init_params(key, input_size, h1, h2, h3, output_size):
    """nn.Linear-style init: uniform(-1/sqrt(fan_in), 1/sqrt(fan_in)).

    Weights stored as (in, out) == transpose of PyTorch's (out, in); math is identical
    since the kernel computes x @ W instead of x @ W.T.
    """
    sizes = [(input_size, h1), (h1, h2), (h2, h3), (h3, output_size)]
    params = {}
    for i, (fan_in, fan_out) in enumerate(sizes, start=1):
        key, kw, kb = jax.random.split(key, 3)
        bound = 1.0 / math.sqrt(fan_in)
        params[f"w{i}"] = jax.random.uniform(
            kw, (fan_in, fan_out), jnp.float32, minval=-bound, maxval=bound)
        params[f"b{i}"] = jax.random.uniform(
            kb, (1, fan_out), jnp.float32, minval=-bound, maxval=bound)
    return params


def prepare_params(params):
    """Pad every weight to (128, 128) bf16 and every bias to (1, 128) f32 (zero fill)."""
    prepped = {}
    for i in range(1, 5):
        w = params[f"w{i}"]
        b = params[f"b{i}"]
        fan_in, fan_out = w.shape
        wp = jnp.zeros((_round_up(fan_in, LANE), _round_up(fan_out, LANE)), jnp.bfloat16)
        wp = wp.at[:fan_in, :fan_out].set(w.astype(jnp.bfloat16))
        bp = jnp.zeros((1, _round_up(fan_out, LANE)), jnp.float32)
        bp = bp.at[:, :fan_out].set(b)
        prepped[f"w{i}"] = wp
        prepped[f"b{i}"] = bp
    return prepped


def critical_network_forward(state, prepped_params, output_size):
    """Run the full critic MLP inside one Pallas kernel.

    state: (B, input_size) float32
    prepped_params: output of prepare_params (padded bf16 weights, padded f32 biases)
    returns: (B, output_size) float32
    """
    w1, b1 = prepped_params["w1"], prepped_params["b1"]
    w2, b2 = prepped_params["w2"], prepped_params["b2"]
    w3, b3 = prepped_params["w3"], prepped_params["b3"]
    w4, b4 = prepped_params["w4"], prepped_params["b4"]

    B, d_in = state.shape
    d_in_pad = w1.shape[0]
    d_out_pad = w4.shape[1]

    # Batch tile: 128 rows for large batches, otherwise the (sublane-rounded) batch.
    tm = 128 if B >= 128 else max(SUBLANE, _round_up(B, SUBLANE))
    b_pad = _round_up(B, tm)

    # Pad + cast the activation stream once (lane-dense bf16 input slab).
    x_pad = jnp.zeros((b_pad, d_in_pad), jnp.bfloat16)
    x_pad = x_pad.at[:B, :d_in].set(state.astype(jnp.bfloat16))

    grid = (b_pad // tm,)

    x_spec = pl.BlockSpec((tm, d_in_pad), lambda i: (i, 0))
    w_spec = pl.BlockSpec((LANE, LANE), lambda i: (0, 0))       # VMEM-resident weights
    b_spec = pl.BlockSpec((1, LANE), lambda i: (0, 0))
    out_spec = pl.BlockSpec((tm, d_out_pad), lambda i: (i, 0))  # lane-dense output slab

    flops = 2 * b_pad * (LANE * LANE) * 4
    bytes_accessed = (x_pad.size * 2) + 4 * (LANE * LANE * 2) + 4 * (LANE * 4) \
        + (b_pad * d_out_pad * 4)

    out_pad = pl.pallas_call(
        _critic_kernel,
        out_shape=jax.ShapeDtypeStruct((b_pad, d_out_pad), jnp.float32),
        grid=grid,
        in_specs=[x_spec,
                  w_spec, b_spec,
                  w_spec, b_spec,
                  w_spec, b_spec,
                  w_spec, b_spec],
        out_specs=out_spec,
        compiler_params=pltpu.CompilerParams(
            dimension_semantics=("parallel",)),
        cost_estimate=pl.CostEstimate(
            flops=flops, transcendentals=0, bytes_accessed=bytes_accessed),
    )(x_pad, w1, b1, w2, b2, w3, b3, w4, b4)

    # Slice back to the logical (B, output_size) result outside the kernel.
    return out_pad[:B, :output_size]


def _reference_forward(state, params):
    h = jnp.maximum(state @ params["w1"] + params["b1"], 0.0)
    h = jnp.maximum(h @ params["w2"] + params["b2"], 0.0)
    h = jnp.maximum(h @ params["w3"] + params["b3"], 0.0)
    return h @ params["w4"] + params["b4"]


if __name__ == "__main__":
    # Critic maps a state vector to a scalar value; small batched RL states.
    batch = 32
    input_size, hidden1, hidden2, hidden3, output_size = 16, 32, 32, 32, 1

    key = jax.random.PRNGKey(0)
    key, kx = jax.random.split(key)
    state = jax.random.normal(kx, (batch, input_size), jnp.float32)
    params = init_params(key, input_size, hidden1, hidden2, hidden3, output_size)
    prepped = prepare_params(params)

    fwd = jax.jit(lambda s, p: critical_network_forward(s, p, output_size))
    value = fwd(state, prepped)
    value = jax.block_until_ready(value)

    ref = _reference_forward(state, params)
    assert value.shape == (batch, output_size)
    # bf16 matmul inputs with f32 accumulation: loosen tolerance vs. the pure-f32 ref.
    assert jnp.allclose(value, ref, atol=2e-2, rtol=2e-2), float(
        jnp.max(jnp.abs(value - ref)))
    print("KERNEL_OK")
</pallas_src>

<mosaic_0001>
module attributes {stable_mosaic.version = 11 : i64} {
  func.func @_critic_kernel(%arg0: i32, %arg1: memref<32x128xbf16, #tpu.memory_space<vmem>>, %arg2: memref<128x128xbf16, #tpu.memory_space<vmem>>, %arg3: memref<1x128xf32, #tpu.memory_space<vmem>>, %arg4: memref<128x128xbf16, #tpu.memory_space<vmem>>, %arg5: memref<1x128xf32, #tpu.memory_space<vmem>>, %arg6: memref<128x128xbf16, #tpu.memory_space<vmem>>, %arg7: memref<1x128xf32, #tpu.memory_space<vmem>>, %arg8: memref<128x128xbf16, #tpu.memory_space<vmem>>, %arg9: memref<1x128xf32, #tpu.memory_space<vmem>>, %arg10: memref<32x128xf32, #tpu.memory_space<vmem>>) attributes {dimension_semantics = [#tpu.dimension_semantics<parallel>], iteration_bounds = array<i64: 1>, scalar_prefetch = 0 : i64, scratch_operands = 0 : i64, tpu.core_type = #tpu.core_type<tc>, window_params = [{transform_indices = @transform_0, window_bounds = array<i64: 32, 128>}, {pipeline_mode = #tpu.pipeline_mode<synchronous>, transform_indices = @transform_1, window_bounds = array<i64: 128, 128>}, {pipeline_mode = #tpu.pipeline_mode<synchronous>, transform_indices = @transform_2, window_bounds = array<i64: 1, 128>}, {pipeline_mode = #tpu.pipeline_mode<synchronous>, transform_indices = @transform_3, window_bounds = array<i64: 128, 128>}, {pipeline_mode = #tpu.pipeline_mode<synchronous>, transform_indices = @transform_4, window_bounds = array<i64: 1, 128>}, {pipeline_mode = #tpu.pipeline_mode<synchronous>, transform_indices = @transform_5, window_bounds = array<i64: 128, 128>}, {pipeline_mode = #tpu.pipeline_mode<synchronous>, transform_indices = @transform_6, window_bounds = array<i64: 1, 128>}, {pipeline_mode = #tpu.pipeline_mode<synchronous>, transform_indices = @transform_7, window_bounds = array<i64: 128, 128>}, {pipeline_mode = #tpu.pipeline_mode<synchronous>, transform_indices = @transform_8, window_bounds = array<i64: 1, 128>}, {transform_indices = @transform_9, window_bounds = array<i64: 32, 128>}]} {
    %c0 = arith.constant 0 : index
    %c0_0 = arith.constant 0 : index
    %0 = vector.load %arg1[%c0, %c0_0] : memref<32x128xbf16, #tpu.memory_space<vmem>>, vector<32x128xbf16>
    %c0_1 = arith.constant 0 : index
    %c0_2 = arith.constant 0 : index
    %1 = vector.load %arg2[%c0_1, %c0_2] : memref<128x128xbf16, #tpu.memory_space<vmem>>, vector<128x128xbf16>
    %cst = arith.constant dense<0.000000e+00> : vector<32x128xf32>
    %2 = tpu.matmul %0, %1, %cst {dimension_numbers = #tpu.dot_dimension_numbers<[1], [0], [0], [1], [0, 0, 1, 1], [], []>} : vector<32x128xbf16>, vector<128x128xbf16>, vector<32x128xf32> -> vector<32x128xf32>
    %c0_3 = arith.constant 0 : index
    %c0_4 = arith.constant 0 : index
    %3 = vector.load %arg3[%c0_3, %c0_4] : memref<1x128xf32, #tpu.memory_space<vmem>>, vector<1x128xf32>
    %4 = vector.broadcast %3 : vector<1x128xf32> to vector<32x128xf32>
    %5 = arith.addf %2, %4 : vector<32x128xf32>
    %cst_5 = arith.constant 0.000000e+00 : f32
    %6 = vector.broadcast %cst_5 : f32 to vector<32x128xf32>
    %7 = arith.maximumf %5, %6 : vector<32x128xf32>
    %8 = arith.truncf %7 : vector<32x128xf32> to vector<32x128xbf16>
    %c0_6 = arith.constant 0 : index
    %c0_7 = arith.constant 0 : index
    %9 = vector.load %arg4[%c0_6, %c0_7] : memref<128x128xbf16, #tpu.memory_space<vmem>>, vector<128x128xbf16>
    %cst_8 = arith.constant dense<0.000000e+00> : vector<32x128xf32>
    %10 = tpu.matmul %8, %9, %cst_8 {dimension_numbers = #tpu.dot_dimension_numbers<[1], [0], [0], [1], [0, 0, 1, 1], [], []>} : vector<32x128xbf16>, vector<128x128xbf16>, vector<32x128xf32> -> vector<32x128xf32>
    %c0_9 = arith.constant 0 : index
    %c0_10 = arith.constant 0 : index
    %11 = vector.load %arg5[%c0_9, %c0_10] : memref<1x128xf32, #tpu.memory_space<vmem>>, vector<1x128xf32>
    %12 = vector.broadcast %11 : vector<1x128xf32> to vector<32x128xf32>
    %13 = arith.addf %10, %12 : vector<32x128xf32>
    %cst_11 = arith.constant 0.000000e+00 : f32
    %14 = vector.broadcast %cst_11 : f32 to vector<32x128xf32>
    %15 = arith.maximumf %13, %14 : vector<32x128xf32>
    %16 = arith.truncf %15 : vector<32x128xf32> to vector<32x128xbf16>
    %c0_12 = arith.constant 0 : index
    %c0_13 = arith.constant 0 : index
    %17 = vector.load %arg6[%c0_12, %c0_13] : memref<128x128xbf16, #tpu.memory_space<vmem>>, vector<128x128xbf16>
    %cst_14 = arith.constant dense<0.000000e+00> : vector<32x128xf32>
    %18 = tpu.matmul %16, %17, %cst_14 {dimension_numbers = #tpu.dot_dimension_numbers<[1], [0], [0], [1], [0, 0, 1, 1], [], []>} : vector<32x128xbf16>, vector<128x128xbf16>, vector<32x128xf32> -> vector<32x128xf32>
    %c0_15 = arith.constant 0 : index
    %c0_16 = arith.constant 0 : index
    %19 = vector.load %arg7[%c0_15, %c0_16] : memref<1x128xf32, #tpu.memory_space<vmem>>, vector<1x128xf32>
    %20 = vector.broadcast %19 : vector<1x128xf32> to vector<32x128xf32>
    %21 = arith.addf %18, %20 : vector<32x128xf32>
    %cst_17 = arith.constant 0.000000e+00 : f32
    %22 = vector.broadcast %cst_17 : f32 to vector<32x128xf32>
    %23 = arith.maximumf %21, %22 : vector<32x128xf32>
    %24 = arith.truncf %23 : vector<32x128xf32> to vector<32x128xbf16>
    %c0_18 = arith.constant 0 : index
    %c0_19 = arith.constant 0 : index
    %25 = vector.load %arg8[%c0_18, %c0_19] : memref<128x128xbf16, #tpu.memory_space<vmem>>, vector<128x128xbf16>
    %cst_20 = arith.constant dense<0.000000e+00> : vector<32x128xf32>
    %26 = tpu.matmul %24, %25, %cst_20 {dimension_numbers = #tpu.dot_dimension_numbers<[1], [0], [0], [1], [0, 0, 1, 1], [], []>} : vector<32x128xbf16>, vector<128x128xbf16>, vector<32x128xf32> -> vector<32x128xf32>
    %c0_21 = arith.constant 0 : index
    %c0_22 = arith.constant 0 : index
    %27 = vector.load %arg9[%c0_21, %c0_22] : memref<1x128xf32, #tpu.memory_space<vmem>>, vector<1x128xf32>
    %28 = vector.broadcast %27 : vector<1x128xf32> to vector<32x128xf32>
    %29 = arith.addf %26, %28 : vector<32x128xf32>
    %c0_23 = arith.constant 0 : index
    %c0_24 = arith.constant 0 : index
    %30 = vector.load %arg10[%c0_23, %c0_24] : memref<32x128xf32, #tpu.memory_space<vmem>>, vector<32x128xf32>
    tpu.vector_store %arg10[%c0_23, %c0_24], %29 {strides = array<i32>} : memref<32x128xf32, #tpu.memory_space<vmem>>, vector<32x128xf32>,
    return
  }
  func.func @transform_0(%arg0: i32) -> (i32, i32) {
    %c0_i32 = arith.constant 0 : i32
    %c0_i32_0 = arith.constant 0 : i32
    return %arg0, %c0_i32 : i32, i32
  }
  func.func @transform_1(%arg0: i32) -> (i32, i32) {
    %c0_i32 = arith.constant 0 : i32
    %c0_i32_0 = arith.constant 0 : i32
    %c0_i32_1 = arith.constant 0 : i32
    return %c0_i32, %c0_i32_0 : i32, i32
  }
  func.func @transform_2(%arg0: i32) -> (i32, i32) {
    %c0_i32 = arith.constant 0 : i32
    %c0_i32_0 = arith.constant 0 : i32
    %c0_i32_1 = arith.constant 0 : i32
    return %c0_i32, %c0_i32_0 : i32, i32
  }
  func.func @transform_3(%arg0: i32) -> (i32, i32) {
    %c0_i32 = arith.constant 0 : i32
    %c0_i32_0 = arith.constant 0 : i32
    %c0_i32_1 = arith.constant 0 : i32
    return %c0_i32, %c0_i32_0 : i32, i32
  }
  func.func @transform_4(%arg0: i32) -> (i32, i32) {
    %c0_i32 = arith.constant 0 : i32
    %c0_i32_0 = arith.constant 0 : i32
    %c0_i32_1 = arith.constant 0 : i32
    return %c0_i32, %c0_i32_0 : i32, i32
  }
  func.func @transform_5(%arg0: i32) -> (i32, i32) {
    %c0_i32 = arith.constant 0 : i32
    %c0_i32_0 = arith.constant 0 : i32
    %c0_i32_1 = arith.constant 0 : i32
    return %c0_i32, %c0_i32_0 : i32, i32
  }
  func.func @transform_6(%arg0: i32) -> (i32, i32) {
    %c0_i32 = arith.constant 0 : i32
    %c0_i32_0 = arith.constant 0 : i32
    %c0_i32_1 = arith.constant 0 : i32
    return %c0_i32, %c0_i32_0 : i32, i32
  }
  func.func @transform_7(%arg0: i32) -> (i32, i32) {
    %c0_i32 = arith.constant 0 : i32
    %c0_i32_0 = arith.constant 0 : i32
    %c0_i32_1 = arith.constant 0 : i32
    return %c0_i32, %c0_i32_0 : i32, i32
  }
  func.func @transform_8(%arg0: i32) -> (i32, i32) {
    %c0_i32 = arith.constant 0 : i32
    %c0_i32_0 = arith.constant 0 : i32
    %c0_i32_1 = arith.constant 0 : i32
    return %c0_i32, %c0_i32_0 : i32, i32
  }
  func.func @transform_9(%arg0: i32) -> (i32, i32) {
    %c0_i32 = arith.constant 0 : i32
    %c0_i32_0 = arith.constant 0 : i32
    return %arg0, %c0_i32 : i32, i32
  }
}

</mosaic_0001>

<llo_original>
// kernel: _lambda_.1
$region0: #{_lambda_.1}
  #allocation0 [shape = 'u32[]', space=smem, size = 0x4, offset = 0x4, fixed_abs, tag = 'smem constant byte address 0x4 - core index']
  #allocation1 [shape = 'u32[144,128]{1,0:T(1,128)}', space=vmem, size = 0x12000, scoped, tag = 'internal scratch']
  %s0 = inlined_call_operand.vmem [shape: bf16[32,128], index: 0, kind: input, shape index: {}]
  %s1 = inlined_call_operand.vmem [shape: bf16[128,128], index: 1, kind: input, shape index: {}]
  %s2 = inlined_call_operand.hbm [shape: f32[1,128], index: 2, kind: input, shape index: {}]
  %s3 = inlined_call_operand.hbm [shape: bf16[128,128], index: 3, kind: input, shape index: {}]
  %s4 = inlined_call_operand.hbm [shape: f32[1,128], index: 4, kind: input, shape index: {}]
  %s5 = inlined_call_operand.vmem [shape: bf16[128,128], index: 5, kind: input, shape index: {}]
  %s6 = inlined_call_operand.hbm [shape: f32[1,128], index: 6, kind: input, shape index: {}]
  %s7 = inlined_call_operand.hbm [shape: bf16[128,128], index: 7, kind: input, shape index: {}]
  %s8 = inlined_call_operand.hbm [shape: f32[1,128], index: 8, kind: input, shape index: {}]
  %s9 = inlined_call_operand.vmem [shape: f32[32,128], index: 9, kind: output, shape index: {}]
  %s10 = sld [smem:[#allocation0]]
  $region70: #{_lambda_.1} parent=0
    _
  %s12 = ssub.s32 1, %s10
  %s13 = scalar_select 0, %s12, %s10
  $region1: #{_lambda_.1} parent=0
    #allocation2 [shape = 'u8[512]{0}', space=vmem, size = 0x400, scoped, tag = 'input window, operand 2, single buffered']
    #allocation3 [shape = 's32[1]{0}', space=sflag, size = 0x4, scoped, tag = 'scoped memory for _lambda_.1']
    #allocation4 [shape = 'u8[32768]{0}', space=vmem, size = 0x8000, scoped, tag = 'input window, operand 3, single buffered']
    #allocation5 [shape = 's32[1]{0}', space=sflag, size = 0x4, scoped, tag = 'scoped memory for _lambda_.1']
    #allocation6 [shape = 'u8[512]{0}', space=vmem, size = 0x400, scoped, tag = 'input window, operand 4, single buffered']
    #allocation7 [shape = 'u8[512]{0}', space=vmem, size = 0x400, scoped, tag = 'input window, operand 6, single buffered']
    #allocation8 [shape = 's32[1]{0}', space=sflag, size = 0x4, scoped, tag = 'scoped memory for _lambda_.1']
    #allocation9 [shape = 'u8[32768]{0}', space=vmem, size = 0x8000, scoped, tag = 'input window, operand 7, single buffered']
    #allocation10 [shape = 'u8[512]{0}', space=vmem, size = 0x400, scoped, tag = 'input window, operand 8, single buffered']
    #allocation11 [shape = 's32[1]{0}', space=sflag, size = 0x4, scoped, tag = 'scoped memory for _lambda_.1']
    %14 = vsyncpa [#allocation3], 0
    %15 = vsyncpa [#allocation5], 0
    %16 = vsyncpa [#allocation8], 0
    %17 = vsyncpa [#allocation11], 0
    // Predicated region
    $region2: #{_lambda_.1} parent=1 // pred_check
      _
    $region3: #{_lambda_.1} parent=1 // pred_check_branch
      %19 = sbr.rel (0) target = $region5
    $region4: #{_lambda_.1} parent=1 // pred_region
      _
    $region5: #{_lambda_.1} parent=1 // pred_fallthru
      _
    // Predicated region
    $region6: #{_lambda_.1} parent=1 // pred_check
      _
    $region7: #{_lambda_.1} parent=1 // pred_check_branch
      %21 = sbr.rel (0) target = $region9
    $region8: #{_lambda_.1} parent=1 // pred_region
      _
    $region9: #{_lambda_.1} parent=1 // pred_fallthru
      _
    // Predicated region
    $region10: #{_lambda_.1} parent=1 // pred_check
      _
    $region11: #{_lambda_.1} parent=1 // pred_check_branch
      %23 = sbr.rel (0) target = $region13
    $region12: #{_lambda_.1} parent=1 // pred_region
      %s25 = ssub.s32 16, 16
      %26 = vsyncadd [#allocation3], %s25
      %s28 = sshll.u32 [#allocation2], 4
      %s29 = int_to_ptr.vmem [resolvable:$true] %s28
      %31 = dma.hbm_to_vmem [thread:$0]  %s2, 16, %s29, [#allocation3]
    $region13: #{_lambda_.1} parent=1 // pred_fallthru
      _
    // Predicated region
    $region14: #{_lambda_.1} parent=1 // pred_check
      _
    $region15: #{_lambda_.1} parent=1 // pred_check_branch
      %33 = sbr.rel (0) target = $region17
    $region16: #{_lambda_.1} parent=1 // pred_region
      %s35 = ssub.s32 1024, 1024
      %36 = vsyncadd [#allocation5], %s35
      %s37 = sshll.u32 [#allocation4], 4
      %s38 = int_to_ptr.vmem [resolvable:$true] %s37
      %43 = dma.hbm_to_vmem [thread:$0]  %s3, 1024, %s38, [#allocation5], 64, 64, 4
    $region17: #{_lambda_.1} parent=1 // pred_fallthru
      _
    // Predicated region
    $region18: #{_lambda_.1} parent=1 // pred_check
      _
    $region19: #{_lambda_.1} parent=1 // pred_check_branch
      %45 = sbr.rel (0) target = $region21
    $region20: #{_lambda_.1} parent=1 // pred_region
      %s47 = ssub.s32 16, 16
      %48 = vsyncadd [#allocation5], %s47
      %s50 = sshll.u32 [#allocation6], 4
      %s51 = int_to_ptr.vmem [resolvable:$true] %s50
      %53 = dma.hbm_to_vmem [thread:$0]  %s4, 16, %s51, [#allocation5]
    $region21: #{_lambda_.1} parent=1 // pred_fallthru
      _
    // Predicated region
    $region22: #{_lambda_.1} parent=1 // pred_check
      _
    $region23: #{_lambda_.1} parent=1 // pred_check_branch
      %55 = sbr.rel (0) target = $region25
    $region24: #{_lambda_.1} parent=1 // pred_region
      _
    $region25: #{_lambda_.1} parent=1 // pred_fallthru
      _
    // Predicated region
    $region26: #{_lambda_.1} parent=1 // pred_check
      _
    $region27: #{_lambda_.1} parent=1 // pred_check_branch
      %57 = sbr.rel (0) target = $region29
    $region28: #{_lambda_.1} parent=1 // pred_region
      %s59 = ssub.s32 16, 16
      %60 = vsyncadd [#allocation8], %s59
      %s62 = sshll.u32 [#allocation7], 4
      %s63 = int_to_ptr.vmem [resolvable:$true] %s62
      %65 = dma.hbm_to_vmem [thread:$0]  %s6, 16, %s63, [#allocation8]
    $region29: #{_lambda_.1} parent=1 // pred_fallthru
      _
    // Predicated region
    $region30: #{_lambda_.1} parent=1 // pred_check
      _
    $region31: #{_lambda_.1} parent=1 // pred_check_branch
      %67 = sbr.rel (0) target = $region33
    $region32: #{_lambda_.1} parent=1 // pred_region
      %s69 = ssub.s32 1024, 1024
      %70 = vsyncadd [#allocation8], %s69
      %s71 = sshll.u32 [#allocation9], 4
      %s72 = int_to_ptr.vmem [resolvable:$true] %s71
      %77 = dma.hbm_to_vmem [thread:$0]  %s7, 1024, %s72, [#allocation8], 64, 64, 4
    $region33: #{_lambda_.1} parent=1 // pred_fallthru
      _
    // Predicated region
    $region34: #{_lambda_.1} parent=1 // pred_check
      _
    $region35: #{_lambda_.1} parent=1 // pred_check_branch
      %79 = sbr.rel (0) target = $region37
    $region36: #{_lambda_.1} parent=1 // pred_region
      %s81 = ssub.s32 16, 16
      %82 = vsyncadd [#allocation11], %s81
      %s84 = sshll.u32 [#allocation10], 4
      %s85 = int_to_ptr.vmem [resolvable:$true] %s84
      %87 = dma.hbm_to_vmem [thread:$0]  %s8, 16, %s85, [#allocation11]
    $region37: #{_lambda_.1} parent=1 // pred_fallthru
      _
    // Predicated region
    $region38: #{_lambda_.1} parent=1 // pred_check
      _
    $region39: #{_lambda_.1} parent=1 // pred_check_branch
      %89 = sbr.rel (0) target = $region41
    $region40: #{_lambda_.1} parent=1 // pred_region
      %90 = dma.done [#allocation3], 16
    $region41: #{_lambda_.1} parent=1 // pred_fallthru
      _
    // Predicated region
    $region42: #{_lambda_.1} parent=1 // pred_check
      _
    $region43: #{_lambda_.1} parent=1 // pred_check_branch
      %92 = sbr.rel (0) target = $region45
    $region44: #{_lambda_.1} parent=1 // pred_region
      %93 = dma.done [#allocation5], 1024
    $region45: #{_lambda_.1} parent=1 // pred_fallthru
      _
    // Predicated region
    $region46: #{_lambda_.1} parent=1 // pred_check
      _
    $region47: #{_lambda_.1} parent=1 // pred_check_branch
      %95 = sbr.rel (0) target = $region49
    $region48: #{_lambda_.1} parent=1 // pred_region
      %96 = dma.done [#allocation5], 16
    $region49: #{_lambda_.1} parent=1 // pred_fallthru
      _
    // Predicated region
    $region50: #{_lambda_.1} parent=1 // pred_check
      _
    $region51: #{_lambda_.1} parent=1 // pred_check_branch
      %98 = sbr.rel (0) target = $region53
    $region52: #{_lambda_.1} parent=1 // pred_region
      %99 = dma.done [#allocation8], 16
    $region53: #{_lambda_.1} parent=1 // pred_fallthru
      _
    // Predicated region
    $region54: #{_lambda_.1} parent=1 // pred_check
      _
    $region55: #{_lambda_.1} parent=1 // pred_check_branch
      %101 = sbr.rel (0) target = $region57
    $region56: #{_lambda_.1} parent=1 // pred_region
      %102 = dma.done [#allocation8], 1024
    $region57: #{_lambda_.1} parent=1 // pred_fallthru
      _
    // Predicated region
    $region58: #{_lambda_.1} parent=1 // pred_check
      _
    $region59: #{_lambda_.1} parent=1 // pred_check_branch
      %104 = sbr.rel (0) target = $region61
    $region60: #{_lambda_.1} parent=1 // pred_region
      %105 = dma.done [#allocation11], 16
    $region61: #{_lambda_.1} parent=1 // pred_fallthru
      _
    %v107 = vld [vmem:[%s0] sm:$0xf]
    %v108 = vld [vmem:[%s0 + $0x4] sm:$0xf]
    %v109 = vld [vmem:[%s0 + $0x8] sm:$0xf]
    %v110 = vld [vmem:[%s0 + $0xc] sm:$0xf]
    %v111 = vld [vmem:[%s1] sm:$0xf]
    %v112 = vld [vmem:[%s1 + $0x4] sm:$0xf]
    %v113 = vld [vmem:[%s1 + $0x8] sm:$0xf]
    %v114 = vld [vmem:[%s1 + $0xc] sm:$0xf]
    %v115 = vld [vmem:[%s1 + $0x10] sm:$0xf]
    %v116 = vld [vmem:[%s1 + $0x14] sm:$0xf]
    %v117 = vld [vmem:[%s1 + $0x18] sm:$0xf]
    %v118 = vld [vmem:[%s1 + $0x1c] sm:$0xf]
    %v119 = vld [vmem:[%s1 + $0x20] sm:$0xf]
    %v120 = vld [vmem:[%s1 + $0x24] sm:$0xf]
    %v121 = vld [vmem:[%s1 + $0x28] sm:$0xf]
    %v122 = vld [vmem:[%s1 + $0x2c] sm:$0xf]
    %v123 = vld [vmem:[%s1 + $0x30] sm:$0xf]
    %v124 = vld [vmem:[%s1 + $0x34] sm:$0xf]
    %v125 = vld [vmem:[%s1 + $0x38] sm:$0xf]
    %v126 = vld [vmem:[%s1 + $0x3c] sm:$0xf]
    %v127 = vld [vmem:[#allocation2] sm:$0x1]
    %v129 = vlaneseq
    %v130 = vshrl.u32 %v129, 7
    %v131 = vsub.s32 0, %v130
    %v132 = vrot.slane %v127, %v131
    %v138 = vunpack.c.l.b16 %v107
    %v139 = vunpack.c.l.b16 %v108
    %v140 = vunpack.c.l.b16 %v109
    %v141 = vunpack.c.l.b16 %v110
    %v142 = vpack.c.b16 %v139, %v138
    %v143 = vpack.c.b16 %v141, %v140
    %v162 = vunpack.c.l.b16 %v111
    %v163 = vunpack.c.l.b16 %v112
    %v164 = vunpack.c.l.b16 %v113
    %v165 = vunpack.c.l.b16 %v114
    %v166 = vunpack.c.l.b16 %v115
    %v167 = vunpack.c.l.b16 %v116
    %v168 = vunpack.c.l.b16 %v117
    %v169 = vunpack.c.l.b16 %v118
    %v170 = vunpack.c.l.b16 %v119
    %v171 = vunpack.c.l.b16 %v120
    %v172 = vunpack.c.l.b16 %v121
    %v173 = vunpack.c.l.b16 %v122
    %v174 = vunpack.c.l.b16 %v123
    %v175 = vunpack.c.l.b16 %v124
    %v176 = vunpack.c.l.b16 %v125
    %v177 = vunpack.c.l.b16 %v126
    %v178 = vpack.c.b16 %v163, %v162
    %v179 = vpack.c.b16 %v165, %v164
    %v180 = vpack.c.b16 %v167, %v166
    %v181 = vpack.c.b16 %v169, %v168
    %v182 = vpack.c.b16 %v171, %v170
    %v183 = vpack.c.b16 %v173, %v172
    %v184 = vpack.c.b16 %v175, %v174
    %v185 = vpack.c.b16 %v177, %v176
    %194 = vmatprep.subr.bf16.mxu0 0
    %195 = vmatpush1.bf16.msra.mxu0 %v178
    %196 = vmatprep.subr.bf16.mxu0 0
    %197 = vmatpush1.bf16.msra.mxu0 %v179
    %198 = vmatprep.subr.bf16.mxu0 0
    %199 = vmatpush1.bf16.msra.mxu0 %v180
    %200 = vmatprep.subr.bf16.mxu0 0
    %201 = vmatpush1.bf16.msra.mxu0 %v181
    %202 = vmatprep.subr.bf16.mxu0 0
    %203 = vmatpush1.bf16.msra.mxu0 %v182
    %204 = vmatprep.subr.bf16.mxu0 0
    %205 = vmatpush1.bf16.msra.mxu0 %v183
    %206 = vmatprep.subr.bf16.mxu0 0
    %207 = vmatpush1.bf16.msra.mxu0 %v184
    %208 = vmatprep.subr.bf16.mxu0 0
    %209 = vmatpush1.bf16.msra.mxu0 %v185
    %210 = vmatprep.subr.bf16.mxu0 0
    %211 = vmatpush1.bf16.msra.mxu0 0
    %212 = vmatprep.subr.bf16.mxu0 0
    %213 = vmatpush1.bf16.msra.mxu0 0
    %214 = vmatprep.subr.bf16.mxu0 0
    %215 = vmatpush1.bf16.msra.mxu0 0
    %216 = vmatprep.subr.bf16.mxu0 0
    %217 = vmatpush1.bf16.msra.mxu0 0
    %218 = vmatprep.subr.bf16.mxu0 0
    %219 = vmatpush1.bf16.msra.mxu0 0
    %220 = vmatprep.subr.bf16.mxu0 0
    %221 = vmatpush1.bf16.msra.mxu0 0
    %222 = vmatprep.subr.bf16.mxu0 0
    %223 = vmatpush1.bf16.msra.mxu0 0
    %224 = vmatprep.subr.bf16.mxu0 0
    %225 = vmatpush1.bf16.msra.mxu0 0
    %226 = vmatprep.mubr.bf16.mxu0 0
    %227 = vmatmul.mubr.bf16.gmra.mrb[0].mxu0 %v142
    %v228 = vpop.f32.mrb[0].mxu0
    %v229 = vadd.f32 %v132, %v228
    %v230 = vpop.f32.mrb[0].mxu0
    %v231 = vpop.f32.mrb[0].mxu0
    %v232 = vadd.f32 %v132, %v231
    %v233 = vpop.f32.mrb[0].mxu0
    %234 = vmatprep.mubr.bf16.mxu0 0
    %235 = vmatmul.mubr.bf16.gmra.mrb[0].mxu0 %v143
    %v236 = vpop.f32.mrb[0].mxu0
    %v237 = vadd.f32 %v132, %v236
    %v238 = vpop.f32.mrb[0].mxu0
    %v239 = vpop.f32.mrb[0].mxu0
    %v240 = vadd.f32 %v132, %v239
    %v241 = vpop.f32.mrb[0].mxu0
    %242 = vdwg.mxu0
    %v243 = vmax.f32 %v229, 0.0
    %v244 = vmax.f32 %v232, 0.0
    %v245 = vmax.f32 %v237, 0.0
    %v246 = vmax.f32 %v240, 0.0
    %v247 = vpack.c.bf16 %v244, %v243
    %v248 = vpack.c.bf16 %v246, %v245
    %v249 = vld [vmem:[#allocation4] sm:$0xf]
    %v250 = vld [vmem:[#allocation4 + $0x4] sm:$0xf]
    %v251 = vld [vmem:[#allocation4 + $0x8] sm:$0xf]
    %v252 = vld [vmem:[#allocation4 + $0xc] sm:$0xf]
    %v253 = vld [vmem:[#allocation4 + $0x10] sm:$0xf]
    %v254 = vld [vmem:[#allocation4 + $0x14] sm:$0xf]
    %v255 = vld [vmem:[#allocation4 + $0x18] sm:$0xf]
    %v256 = vld [vmem:[#allocation4 + $0x1c] sm:$0xf]
    %v257 = vld [vmem:[#allocation4 + $0x20] sm:$0xf]
    %v258 = vld [vmem:[#allocation4 + $0x24] sm:$0xf]
    %v259 = vld [vmem:[#allocation4 + $0x28] sm:$0xf]
    %v260 = vld [vmem:[#allocation4 + $0x2c] sm:$0xf]
    %v261 = vld [vmem:[#allocation4 + $0x30] sm:$0xf]
    %v262 = vld [vmem:[#allocation4 + $0x34] sm:$0xf]
    %v263 = vld [vmem:[#allocation4 + $0x38] sm:$0xf]
    %v264 = vld [vmem:[#allocation4 + $0x3c] sm:$0xf]
    %v265 = vld [vmem:[#allocation6] sm:$0x1]
    %v267 = vlaneseq
    %v268 = vshrl.u32 %v267, 7
    %v269 = vsub.s32 0, %v268
    %v270 = vrot.slane %v265, %v269
    %v288 = vunpack.c.l.b16 %v249
    %v289 = vunpack.c.l.b16 %v250
    %v290 = vunpack.c.l.b16 %v251
    %v291 = vunpack.c.l.b16 %v252
    %v292 = vunpack.c.l.b16 %v253
    %v293 = vunpack.c.l.b16 %v254
    %v294 = vunpack.c.l.b16 %v255
    %v295 = vunpack.c.l.b16 %v256
    %v296 = vunpack.c.l.b16 %v257
    %v297 = vunpack.c.l.b16 %v258
    %v298 = vunpack.c.l.b16 %v259
    %v299 = vunpack.c.l.b16 %v260
    %v300 = vunpack.c.l.b16 %v261
    %v301 = vunpack.c.l.b16 %v262
    %v302 = vunpack.c.l.b16 %v263
    %v303 = vunpack.c.l.b16 %v264
    %v304 = vpack.c.b16 %v289, %v288
    %v305 = vpack.c.b16 %v291, %v290
    %v306 = vpack.c.b16 %v293, %v292
    %v307 = vpack.c.b16 %v295, %v294
    %v308 = vpack.c.b16 %v297, %v296
    %v309 = vpack.c.b16 %v299, %v298
    %v310 = vpack.c.b16 %v301, %v300
    %v311 = vpack.c.b16 %v303, %v302
    %320 = vmatprep.subr.bf16.mxu0 0
    %321 = vmatpush1.bf16.msra.mxu0 %v304
    %322 = vmatprep.subr.bf16.mxu0 0
    %323 = vmatpush1.bf16.msra.mxu0 %v305
    %324 = vmatprep.subr.bf16.mxu0 0
    %325 = vmatpush1.bf16.msra.mxu0 %v306
    %326 = vmatprep.subr.bf16.mxu0 0
    %327 = vmatpush1.bf16.msra.mxu0 %v307
    %328 = vmatprep.subr.bf16.mxu0 0
    %329 = vmatpush1.bf16.msra.mxu0 %v308
    %330 = vmatprep.subr.bf16.mxu0 0
    %331 = vmatpush1.bf16.msra.mxu0 %v309
    %332 = vmatprep.subr.bf16.mxu0 0
    %333 = vmatpush1.bf16.msra.mxu0 %v310
    %334 = vmatprep.subr.bf16.mxu0 0
    %335 = vmatpush1.bf16.msra.mxu0 %v311
    %336 = vmatprep.subr.bf16.mxu0 0
    %337 = vmatpush1.bf16.msra.mxu0 0
    %338 = vmatprep.subr.bf16.mxu0 0
    %339 = vmatpush1.bf16.msra.mxu0 0
    %340 = vmatprep.subr.bf16.mxu0 0
    %341 = vmatpush1.bf16.msra.mxu0 0
    %342 = vmatprep.subr.bf16.mxu0 0
    %343 = vmatpush1.bf16.msra.mxu0 0
    %344 = vmatprep.subr.bf16.mxu0 0
    %345 = vmatpush1.bf16.msra.mxu0 0
    %346 = vmatprep.subr.bf16.mxu0 0
    %347 = vmatpush1.bf16.msra.mxu0 0
    %348 = vmatprep.subr.bf16.mxu0 0
    %349 = vmatpush1.bf16.msra.mxu0 0
    %350 = vmatprep.subr.bf16.mxu0 0
    %351 = vmatpush1.bf16.msra.mxu0 0
    %352 = vmatprep.mubr.bf16.mxu0 0
    %353 = vmatmul.mubr.bf16.gmra.mrb[0].mxu0 %v247
    %v354 = vpop.f32.mrb[0].mxu0
    %v355 = vadd.f32 %v270, %v354
    %v356 = vpop.f32.mrb[0].mxu0
    %v357 = vpop.f32.mrb[0].mxu0
    %v358 = vadd.f32 %v270, %v357
    %v359 = vpop.f32.mrb[0].mxu0
    %360 = vmatprep.mubr.bf16.mxu0 0
    %361 = vmatmul.mubr.bf16.gmra.mrb[0].mxu0 %v248
    %v362 = vpop.f32.mrb[0].mxu0
    %v363 = vadd.f32 %v270, %v362
    %v364 = vpop.f32.mrb[0].mxu0
    %v365 = vpop.f32.mrb[0].mxu0
    %v366 = vadd.f32 %v270, %v365
    %v367 = vpop.f32.mrb[0].mxu0
    %368 = vdwg.mxu0
    %v369 = vmax.f32 %v355, 0.0
    %v370 = vmax.f32 %v358, 0.0
    %v371 = vmax.f32 %v363, 0.0
    %v372 = vmax.f32 %v366, 0.0
    %v373 = vpack.c.bf16 %v370, %v369
    %v374 = vpack.c.bf16 %v372, %v371
    %v375 = vld [vmem:[%s5] sm:$0xf]
    %v376 = vld [vmem:[%s5 + $0x4] sm:$0xf]
    %v377 = vld [vmem:[%s5 + $0x8] sm:$0xf]
    %v378 = vld [vmem:[%s5 + $0xc] sm:$0xf]
    %v379 = vld [vmem:[%s5 + $0x10] sm:$0xf]
    %v380 = vld [vmem:[%s5 + $0x14] sm:$0xf]
    %v381 = vld [vmem:[%s5 + $0x18] sm:$0xf]
    %v382 = vld [vmem:[%s5 + $0x1c] sm:$0xf]
    %v383 = vld [vmem:[%s5 + $0x20] sm:$0xf]
    %v384 = vld [vmem:[%s5 + $0x24] sm:$0xf]
    %v385 = vld [vmem:[%s5 + $0x28] sm:$0xf]
    %v386 = vld [vmem:[%s5 + $0x2c] sm:$0xf]
    %v387 = vld [vmem:[%s5 + $0x30] sm:$0xf]
    %v388 = vld [vmem:[%s5 + $0x34] sm:$0xf]
    %v389 = vld [vmem:[%s5 + $0x38] sm:$0xf]
    %v390 = vld [vmem:[%s5 + $0x3c] sm:$0xf]
    %v391 = vld [vmem:[#allocation7] sm:$0x1]
    %v393 = vlaneseq
    %v394 = vshrl.u32 %v393, 7
    %v395 = vsub.s32 0, %v394
    %v396 = vrot.slane %v391, %v395
    %v414 = vunpack.c.l.b16 %v375
    %v415 = vunpack.c.l.b16 %v376
    %v416 = vunpack.c.l.b16 %v377
    %v417 = vunpack.c.l.b16 %v378
    %v418 = vunpack.c.l.b16 %v379
    %v419 = vunpack.c.l.b16 %v380
    %v420 = vunpack.c.l.b16 %v381
    %v421 = vunpack.c.l.b16 %v382
    %v422 = vunpack.c.l.b16 %v383
    %v423 = vunpack.c.l.b16 %v384
    %v424 = vunpack.c.l.b16 %v385
    %v425 = vunpack.c.l.b16 %v386
    %v426 = vunpack.c.l.b16 %v387
    %v427 = vunpack.c.l.b16 %v388
    %v428 = vunpack.c.l.b16 %v389
    %v429 = vunpack.c.l.b16 %v390
    %v430 = vpack.c.b16 %v415, %v414
    %v431 = vpack.c.b16 %v417, %v416
    %v432 = vpack.c.b16 %v419, %v418
    %v433 = vpack.c.b16 %v421, %v420
    %v434 = vpack.c.b16 %v423, %v422
    %v435 = vpack.c.b16 %v425, %v424
    %v436 = vpack.c.b16 %v427, %v426
    %v437 = vpack.c.b16 %v429, %v428
    %446 = vmatprep.subr.bf16.mxu0 0
    %447 = vmatpush1.bf16.msra.mxu0 %v430
    %448 = vmatprep.subr.bf16.mxu0 0
    %449 = vmatpush1.bf16.msra.mxu0 %v431
    %450 = vmatprep.subr.bf16.mxu0 0
    %451 = vmatpush1.bf16.msra.mxu0 %v432
    %452 = vmatprep.subr.bf16.mxu0 0
    %453 = vmatpush1.bf16.msra.mxu0 %v433
    %454 = vmatprep.subr.bf16.mxu0 0
    %455 = vmatpush1.bf16.msra.mxu0 %v434
    %456 = vmatprep.subr.bf16.mxu0 0
    %457 = vmatpush1.bf16.msra.mxu0 %v435
    %458 = vmatprep.subr.bf16.mxu0 0
    %459 = vmatpush1.bf16.msra.mxu0 %v436
    %460 = vmatprep.subr.bf16.mxu0 0
    %461 = vmatpush1.bf16.msra.mxu0 %v437
    %462 = vmatprep.subr.bf16.mxu0 0
    %463 = vmatpush1.bf16.msra.mxu0 0
    %464 = vmatprep.subr.bf16.mxu0 0
    %465 = vmatpush1.bf16.msra.mxu0 0
    %466 = vmatprep.subr.bf16.mxu0 0
    %467 = vmatpush1.bf16.msra.mxu0 0
    %468 = vmatprep.subr.bf16.mxu0 0
    %469 = vmatpush1.bf16.msra.mxu0 0
    %470 = vmatprep.subr.bf16.mxu0 0
    %471 = vmatpush1.bf16.msra.mxu0 0
    %472 = vmatprep.subr.bf16.mxu0 0
    %473 = vmatpush1.bf16.msra.mxu0 0
    %474 = vmatprep.subr.bf16.mxu0 0
    %475 = vmatpush1.bf16.msra.mxu0 0
    %476 = vmatprep.subr.bf16.mxu0 0
    %477 = vmatpush1.bf16.msra.mxu0 0
    %478 = vmatprep.mubr.bf16.mxu0 0
    %479 = vmatmul.mubr.bf16.gmra.mrb[0].mxu0 %v373
    %v480 = vpop.f32.mrb[0].mxu0
    %v481 = vadd.f32 %v396, %v480
    %v482 = vpop.f32.mrb[0].mxu0
    %v483 = vpop.f32.mrb[0].mxu0
    %v484 = vadd.f32 %v396, %v483
    %v485 = vpop.f32.mrb[0].mxu0
    %486 = vmatprep.mubr.bf16.mxu0 0
    %487 = vmatmul.mubr.bf16.gmra.mrb[0].mxu0 %v374
    %v488 = vpop.f32.mrb[0].mxu0
    %v489 = vadd.f32 %v396, %v488
    %v490 = vpop.f32.mrb[0].mxu0
    %v491 = vpop.f32.mrb[0].mxu0
    %v492 = vadd.f32 %v396, %v491
    %v493 = vpop.f32.mrb[0].mxu0
    %494 = vdwg.mxu0
    %v495 = vmax.f32 %v481, 0.0
    %v496 = vmax.f32 %v484, 0.0
    %v497 = vmax.f32 %v489, 0.0
    %v498 = vmax.f32 %v492, 0.0
    %v499 = vpack.c.bf16 %v496, %v495
    %v500 = vpack.c.bf16 %v498, %v497
    %v501 = vld [vmem:[#allocation9] sm:$0xf]
    %v502 = vld [vmem:[#allocation9 + $0x4] sm:$0xf]
    %v503 = vld [vmem:[#allocation9 + $0x8] sm:$0xf]
    %v504 = vld [vmem:[#allocation9 + $0xc] sm:$0xf]
    %v505 = vld [vmem:[#allocation9 + $0x10] sm:$0xf]
    %v506 = vld [vmem:[#allocation9 + $0x14] sm:$0xf]
    %v507 = vld [vmem:[#allocation9 + $0x18] sm:$0xf]
    %v508 = vld [vmem:[#allocation9 + $0x1c] sm:$0xf]
    %v509 = vld [vmem:[#allocation9 + $0x20] sm:$0xf]
    %v510 = vld [vmem:[#allocation9 + $0x24] sm:$0xf]
    %v511 = vld [vmem:[#allocation9 + $0x28] sm:$0xf]
    %v512 = vld [vmem:[#allocation9 + $0x2c] sm:$0xf]
    %v513 = vld [vmem:[#allocation9 + $0x30] sm:$0xf]
    %v514 = vld [vmem:[#allocation9 + $0x34] sm:$0xf]
    %v515 = vld [vmem:[#allocation9 + $0x38] sm:$0xf]
    %v516 = vld [vmem:[#allocation9 + $0x3c] sm:$0xf]
    %v517 = vld [vmem:[#allocation10] sm:$0x1]
    %v519 = vlaneseq
    %v520 = vshrl.u32 %v519, 7
    %v521 = vsub.s32 0, %v520
    %v522 = vrot.slane %v517, %v521
    %v540 = vunpack.c.l.b16 %v501
    %v541 = vunpack.c.l.b16 %v502
    %v542 = vunpack.c.l.b16 %v503
    %v543 = vunpack.c.l.b16 %v504
    %v544 = vunpack.c.l.b16 %v505
    %v545 = vunpack.c.l.b16 %v506
    %v546 = vunpack.c.l.b16 %v507
    %v547 = vunpack.c.l.b16 %v508
    %v548 = vunpack.c.l.b16 %v509
    %v549 = vunpack.c.l.b16 %v510
    %v550 = vunpack.c.l.b16 %v511
    %v551 = vunpack.c.l.b16 %v512
    %v552 = vunpack.c.l.b16 %v513
    %v553 = vunpack.c.l.b16 %v514
    %v554 = vunpack.c.l.b16 %v515
    %v555 = vunpack.c.l.b16 %v516
    %v556 = vpack.c.b16 %v541, %v540
    %v557 = vpack.c.b16 %v543, %v542
    %v558 = vpack.c.b16 %v545, %v544
    %v559 = vpack.c.b16 %v547, %v546
    %v560 = vpack.c.b16 %v549, %v548
    %v561 = vpack.c.b16 %v551, %v550
    %v562 = vpack.c.b16 %v553, %v552
    %v563 = vpack.c.b16 %v555, %v554
    %572 = vmatprep.subr.bf16.mxu0 0
    %573 = vmatpush1.bf16.msra.mxu0 %v556
    %574 = vmatprep.subr.bf16.mxu0 0
    %575 = vmatpush1.bf16.msra.mxu0 %v557
    %576 = vmatprep.subr.bf16.mxu0 0
    %577 = vmatpush1.bf16.msra.mxu0 %v558
    %578 = vmatprep.subr.bf16.mxu0 0
    %579 = vmatpush1.bf16.msra.mxu0 %v559
    %580 = vmatprep.subr.bf16.mxu0 0
    %581 = vmatpush1.bf16.msra.mxu0 %v560
    %582 = vmatprep.subr.bf16.mxu0 0
    %583 = vmatpush1.bf16.msra.mxu0 %v561
    %584 = vmatprep.subr.bf16.mxu0 0
    %585 = vmatpush1.bf16.msra.mxu0 %v562
    %586 = vmatprep.subr.bf16.mxu0 0
    %587 = vmatpush1.bf16.msra.mxu0 %v563
    %588 = vmatprep.subr.bf16.mxu0 0
    %589 = vmatpush1.bf16.msra.mxu0 0
    %590 = vmatprep.subr.bf16.mxu0 0
    %591 = vmatpush1.bf16.msra.mxu0 0
    %592 = vmatprep.subr.bf16.mxu0 0
    %593 = vmatpush1.bf16.msra.mxu0 0
    %594 = vmatprep.subr.bf16.mxu0 0
    %595 = vmatpush1.bf16.msra.mxu0 0
    %596 = vmatprep.subr.bf16.mxu0 0
    %597 = vmatpush1.bf16.msra.mxu0 0
    %598 = vmatprep.subr.bf16.mxu0 0
    %599 = vmatpush1.bf16.msra.mxu0 0
    %600 = vmatprep.subr.bf16.mxu0 0
    %601 = vmatpush1.bf16.msra.mxu0 0
    %602 = vmatprep.subr.bf16.mxu0 0
    %603 = vmatpush1.bf16.msra.mxu0 0
    %604 = vmatprep.mubr.bf16.mxu0 0
    %605 = vmatmul.mubr.bf16.gmra.mrb[0].mxu0 %v499
    %v606 = vpop.f32.mrb[0].mxu0
    %v607 = vadd.f32 %v522, %v606
    %v608 = vpop.f32.mrb[0].mxu0
    %v609 = vpop.f32.mrb[0].mxu0
    %v610 = vadd.f32 %v522, %v609
    %v611 = vpop.f32.mrb[0].mxu0
    %612 = vmatprep.mubr.bf16.mxu0 0
    %613 = vmatmul.mubr.bf16.gmra.mrb[0].mxu0 %v500
    %v614 = vpop.f32.mrb[0].mxu0
    %v615 = vadd.f32 %v522, %v614
    %v616 = vpop.f32.mrb[0].mxu0
    %v617 = vpop.f32.mrb[0].mxu0
    %v618 = vadd.f32 %v522, %v617
    %v619 = vpop.f32.mrb[0].mxu0
    %620 = vdwg.mxu0
    %621 = vst [vmem:[%s9] sm:$0xff] %v607
    %622 = vst [vmem:[%s9 + $0x8] sm:$0xff] %v610
    %623 = vst [vmem:[%s9 + $0x10] sm:$0xff] %v615
    %624 = vst [vmem:[%s9 + $0x18] sm:$0xff] %v618
    // Predicated region
    $region62: #{_lambda_.1} parent=1 // pred_check
      _
    $region63: #{_lambda_.1} parent=1 // pred_check_branch
      %626 = sbr.rel (0) target = $region65
    $region64: #{_lambda_.1} parent=1 // pred_region
      _
    $region65: #{_lambda_.1} parent=1 // pred_fallthru
      _
    // Predicated region
    $region66: #{_lambda_.1} parent=1 // pred_check
      _
    $region67: #{_lambda_.1} parent=1 // pred_check_branch
      %628 = sbr.rel (0) target = $region69
    $region68: #{_lambda_.1} parent=1 // pred_region
      _
    $region69: #{_lambda_.1} parent=1 // pred_fallthru
      _
    %629 = vsyncpa [#allocation3], 1
    %630 = vsyncpa [#allocation5], 1
    %631 = vsyncpa [#allocation8], 1
    %632 = vsyncpa [#allocation11], 1

</llo_original>
